<compile_context>
chip_gen: v7x
topology: tpu7x:2x2x1
jax: 0.10.0
libtpu: 0.0.40
codegen_flags: <defaults>
</compile_context>

<pallas_src>
import jax
import jax.numpy as jnp
from jax.experimental import pallas as pl
from jax.experimental.pallas import tpu as pltpu

SIZE = 2                      # self.size in the PyTorch module
CHANNELS = (1, 2, 3, 4, 5)    # channel counts of x1..x5
TOTAL_IN = sum(CHANNELS)
TOTAL_OUT = TOTAL_IN + SIZE


def cat_slice_cat_kernel(x1_ref, x2_ref, x3_ref, x4_ref, x5_ref, o_ref):
    refs = (x1_ref, x2_ref, x3_ref, x4_ref, x5_ref)

    # v1 = cat([x1..x5], dim=1): direct per-input stores into output channel
    # slices (no intermediate concatenate buffers).
    off = 0
    for ref, c in zip(refs, CHANNELS):
        o_ref[:, off:off + c, :] = ref[...]
        off += c

    # v3 = v1[:, 0:SIZE]; v4 = cat([v1, v3], dim=1):
    # duplicate the first SIZE channels, sourced from the blocks already in
    # VMEM (no re-read from HBM).  Static Python loop -> fully unrolled.
    remaining = SIZE
    src = 0
    while remaining > 0:
        take = min(remaining, CHANNELS[src])
        o_ref[:, off:off + take, :] = refs[src][:, 0:take, :]
        off += take
        remaining -= take
        src += 1


def _pick_spatial_tile(hw):
    # Largest convenient 128-multiple tile that divides H*W; keeps blocks small
    # enough for v7x's 64 MiB VMEM while staying lane-dense.
    for t in (2048, 1024, 512, 256, 128):
        if hw % t == 0:
            return t
    return hw  # fall back to full extent (equal-to-full-dim is always legal)


def cat_slice_cat(x1, x2, x3, x4, x5):
    B, _, H, W = x1.shape
    HW = H * W

    # Lane-dense layout: flatten spatial dims so the last dim is a multiple of
    # 128 (here 256) -> unmasked vector loads/stores inside the kernel.
    xs = [x.reshape(B, c, HW) for x, c in zip((x1, x2, x3, x4, x5), CHANNELS)]

    tile = _pick_spatial_tile(HW)
    grid = (B, HW // tile)

    in_specs = [
        pl.BlockSpec((1, c, tile), lambda b, s: (b, 0, s)) for c in CHANNELS
    ]
    out_spec = pl.BlockSpec((1, TOTAL_OUT, tile), lambda b, s: (b, 0, s))

    out = pl.pallas_call(
        cat_slice_cat_kernel,
        out_shape=jax.ShapeDtypeStruct((B, TOTAL_OUT, HW), x1.dtype),
        grid=grid,
        in_specs=in_specs,
        out_specs=out_spec,
        compiler_params=pltpu.CompilerParams(
            dimension_semantics=("parallel", "parallel")),
    )(*xs)

    return out.reshape(B, TOTAL_OUT, H, W)


def reference(x1, x2, x3, x4, x5):
    v1 = jnp.concatenate([x1, x2, x3, x4, x5], axis=1)
    v3 = v1[:, 0:SIZE]
    return jnp.concatenate([v1, v3], axis=1)


if __name__ == "__main__":
    key = jax.random.PRNGKey(0)
    B, H, W = 2, 16, 16
    keys = jax.random.split(key, 5)
    xs = [
        jax.random.normal(k, (B, c, H, W), dtype=jnp.float32)
        for k, c in zip(keys, CHANNELS)
    ]

    out = cat_slice_cat(*xs)
    out = jax.block_until_ready(out)

    ref = reference(*xs)
    assert out.shape == (B, TOTAL_OUT, H, W), out.shape
    assert jnp.allclose(out, ref), "mismatch vs reference"

    print("KERNEL_OK")
</pallas_src>

<mosaic_0001>
module attributes {stable_mosaic.version = 11 : i64} {
  func.func @cat_slice_cat_kernel(%arg0: i32, %arg1: i32, %arg2: memref<1x1x256xf32, #tpu.memory_space<vmem>>, %arg3: memref<1x2x256xf32, #tpu.memory_space<vmem>>, %arg4: memref<1x3x256xf32, #tpu.memory_space<vmem>>, %arg5: memref<1x4x256xf32, #tpu.memory_space<vmem>>, %arg6: memref<1x5x256xf32, #tpu.memory_space<vmem>>, %arg7: memref<1x17x256xf32, #tpu.memory_space<vmem>>) attributes {dimension_semantics = [#tpu.dimension_semantics<parallel>, #tpu.dimension_semantics<parallel>], iteration_bounds = array<i64: 2, 1>, scalar_prefetch = 0 : i64, scratch_operands = 0 : i64, tpu.core_type = #tpu.core_type<tc>, window_params = [{transform_indices = @transform_0, window_bounds = array<i64: 1, 1, 256>}, {transform_indices = @transform_1, window_bounds = array<i64: 1, 2, 256>}, {transform_indices = @transform_2, window_bounds = array<i64: 1, 3, 256>}, {transform_indices = @transform_3, window_bounds = array<i64: 1, 4, 256>}, {transform_indices = @transform_4, window_bounds = array<i64: 1, 5, 256>}, {transform_indices = @transform_5, window_bounds = array<i64: 1, 17, 256>}]} {
    %c0 = arith.constant 0 : index
    %c0_0 = arith.constant 0 : index
    %c0_1 = arith.constant 0 : index
    %0 = vector.load %arg2[%c0, %c0_0, %c0_1] : memref<1x1x256xf32, #tpu.memory_space<vmem>>, vector<1x1x256xf32>
    %c0_2 = arith.constant 0 : index
    %c0_3 = arith.constant 0 : index
    %c0_4 = arith.constant 0 : index
    %1 = vector.load %arg7[%c0_2, %c0_3, %c0_4] : memref<1x17x256xf32, #tpu.memory_space<vmem>>, vector<1x1x256xf32>
    tpu.vector_store %arg7[%c0_2, %c0_3, %c0_4], %0 {strides = array<i32>} : memref<1x17x256xf32, #tpu.memory_space<vmem>>, vector<1x1x256xf32>,
    %c0_5 = arith.constant 0 : index
    %c0_6 = arith.constant 0 : index
    %c0_7 = arith.constant 0 : index
    %2 = vector.load %arg3[%c0_5, %c0_6, %c0_7] : memref<1x2x256xf32, #tpu.memory_space<vmem>>, vector<1x2x256xf32>
    %c0_8 = arith.constant 0 : index
    %c1 = arith.constant 1 : index
    %c0_9 = arith.constant 0 : index
    %3 = vector.load %arg7[%c0_8, %c1, %c0_9] : memref<1x17x256xf32, #tpu.memory_space<vmem>>, vector<1x2x256xf32>
    tpu.vector_store %arg7[%c0_8, %c1, %c0_9], %2 {strides = array<i32>} : memref<1x17x256xf32, #tpu.memory_space<vmem>>, vector<1x2x256xf32>,
    %c0_10 = arith.constant 0 : index
    %c0_11 = arith.constant 0 : index
    %c0_12 = arith.constant 0 : index
    %4 = vector.load %arg4[%c0_10, %c0_11, %c0_12] : memref<1x3x256xf32, #tpu.memory_space<vmem>>, vector<1x3x256xf32>
    %c0_13 = arith.constant 0 : index
    %c3 = arith.constant 3 : index
    %c0_14 = arith.constant 0 : index
    %5 = vector.load %arg7[%c0_13, %c3, %c0_14] : memref<1x17x256xf32, #tpu.memory_space<vmem>>, vector<1x3x256xf32>
    tpu.vector_store %arg7[%c0_13, %c3, %c0_14], %4 {strides = array<i32>} : memref<1x17x256xf32, #tpu.memory_space<vmem>>, vector<1x3x256xf32>,
    %c0_15 = arith.constant 0 : index
    %c0_16 = arith.constant 0 : index
    %c0_17 = arith.constant 0 : index
    %6 = vector.load %arg5[%c0_15, %c0_16, %c0_17] : memref<1x4x256xf32, #tpu.memory_space<vmem>>, vector<1x4x256xf32>
    %c0_18 = arith.constant 0 : index
    %c6 = arith.constant 6 : index
    %c0_19 = arith.constant 0 : index
    %7 = vector.load %arg7[%c0_18, %c6, %c0_19] : memref<1x17x256xf32, #tpu.memory_space<vmem>>, vector<1x4x256xf32>
    tpu.vector_store %arg7[%c0_18, %c6, %c0_19], %6 {strides = array<i32>} : memref<1x17x256xf32, #tpu.memory_space<vmem>>, vector<1x4x256xf32>,
    %c0_20 = arith.constant 0 : index
    %c0_21 = arith.constant 0 : index
    %c0_22 = arith.constant 0 : index
    %8 = vector.load %arg6[%c0_20, %c0_21, %c0_22] : memref<1x5x256xf32, #tpu.memory_space<vmem>>, vector<1x5x256xf32>
    %c0_23 = arith.constant 0 : index
    %c10 = arith.constant 10 : index
    %c0_24 = arith.constant 0 : index
    %9 = vector.load %arg7[%c0_23, %c10, %c0_24] : memref<1x17x256xf32, #tpu.memory_space<vmem>>, vector<1x5x256xf32>
    tpu.vector_store %arg7[%c0_23, %c10, %c0_24], %8 {strides = array<i32>} : memref<1x17x256xf32, #tpu.memory_space<vmem>>, vector<1x5x256xf32>,
    %c0_25 = arith.constant 0 : index
    %c0_26 = arith.constant 0 : index
    %c0_27 = arith.constant 0 : index
    %10 = vector.load %arg2[%c0_25, %c0_26, %c0_27] : memref<1x1x256xf32, #tpu.memory_space<vmem>>, vector<1x1x256xf32>
    %c0_28 = arith.constant 0 : index
    %c15 = arith.constant 15 : index
    %c0_29 = arith.constant 0 : index
    %11 = vector.load %arg7[%c0_28, %c15, %c0_29] : memref<1x17x256xf32, #tpu.memory_space<vmem>>, vector<1x1x256xf32>
    tpu.vector_store %arg7[%c0_28, %c15, %c0_29], %10 {strides = array<i32>} : memref<1x17x256xf32, #tpu.memory_space<vmem>>, vector<1x1x256xf32>,
    %c0_30 = arith.constant 0 : index
    %c0_31 = arith.constant 0 : index
    %c0_32 = arith.constant 0 : index
    %12 = vector.load %arg3[%c0_30, %c0_31, %c0_32] : memref<1x2x256xf32, #tpu.memory_space<vmem>>, vector<1x1x256xf32>
    %c0_33 = arith.constant 0 : index
    %c16 = arith.constant 16 : index
    %c0_34 = arith.constant 0 : index
    %13 = vector.load %arg7[%c0_33, %c16, %c0_34] : memref<1x17x256xf32, #tpu.memory_space<vmem>>, vector<1x1x256xf32>
    tpu.vector_store %arg7[%c0_33, %c16, %c0_34], %12 {strides = array<i32>} : memref<1x17x256xf32, #tpu.memory_space<vmem>>, vector<1x1x256xf32>,
    return
  }
  func.func @transform_0(%arg0: i32, %arg1: i32) -> (i32, i32, i32) {
    %c0_i32 = arith.constant 0 : i32
    %c0_i32_0 = arith.constant 0 : i32
    return %arg0, %c0_i32, %arg1 : i32, i32, i32
  }
  func.func @transform_1(%arg0: i32, %arg1: i32) -> (i32, i32, i32) {
    %c0_i32 = arith.constant 0 : i32
    %c0_i32_0 = arith.constant 0 : i32
    return %arg0, %c0_i32, %arg1 : i32, i32, i32
  }
  func.func @transform_2(%arg0: i32, %arg1: i32) -> (i32, i32, i32) {
    %c0_i32 = arith.constant 0 : i32
    %c0_i32_0 = arith.constant 0 : i32
    return %arg0, %c0_i32, %arg1 : i32, i32, i32
  }
  func.func @transform_3(%arg0: i32, %arg1: i32) -> (i32, i32, i32) {
    %c0_i32 = arith.constant 0 : i32
    %c0_i32_0 = arith.constant 0 : i32
    return %arg0, %c0_i32, %arg1 : i32, i32, i32
  }
  func.func @transform_4(%arg0: i32, %arg1: i32) -> (i32, i32, i32) {
    %c0_i32 = arith.constant 0 : i32
    %c0_i32_0 = arith.constant 0 : i32
    return %arg0, %c0_i32, %arg1 : i32, i32, i32
  }
  func.func @transform_5(%arg0: i32, %arg1: i32) -> (i32, i32, i32) {
    %c0_i32 = arith.constant 0 : i32
    %c0_i32_0 = arith.constant 0 : i32
    return %arg0, %c0_i32, %arg1 : i32, i32, i32
  }
}

</mosaic_0001>

<llo_original>
// kernel: tpu_custom_call.1
$region0: #{tpu_custom_call.1}
  #allocation0 [shape = 'u32[]', space=smem, size = 0x4, offset = 0x4, fixed_abs, tag = 'smem constant byte address 0x4 - core index']
  #allocation1 [shape = 'u32[144,128]{1,0:T(1,128)}', space=vmem, size = 0x12000, scoped, tag = 'internal scratch']
  %s0 = inlined_call_operand.vmem [shape: f32[2,1,256], index: 0, kind: input, shape index: {}]
  %s1 = inlined_call_operand.vmem [shape: f32[2,2,256], index: 1, kind: input, shape index: {}]
  %s2 = inlined_call_operand.vmem [shape: f32[2,3,256], index: 2, kind: input, shape index: {}]
  %s3 = inlined_call_operand.vmem [shape: f32[2,4,256], index: 3, kind: input, shape index: {}]
  %s4 = inlined_call_operand.vmem [shape: f32[2,5,256], index: 4, kind: input, shape index: {}]
  %s5 = inlined_call_operand.vmem [shape: f32[2,17,256], index: 5, kind: output, shape index: {}]
  %s6 = sld [smem:[#allocation0]]
  $region53: #{tpu_custom_call.1} parent=0
    _
  %s8 = ssub.s32 1, %s6
  %s9 = scalar_select 0, %s8, %s6
  loop: start=0, step=1, limit=4
  $region2: #{tpu_custom_call.1} parent=0 // loop_pre_header
    _
  $region3: #{tpu_custom_call.1} parent=0 // loop_header
    %s11 = sphi 0, %s15
    %p12 = scmp.ge.s32.totalorder %s11, 4
    %s18 = sphi 0, %s30
    %s19 = sphi 0, %s26
    %s20 = sphi 0, %s18
    %s21 = sphi 0, %s19
    %s22 = sphi 0, %s20
    %s23 = sphi 0, %s21
    %s35 = sphi 0, %s37
    %s38 = sphi 0, %s35
    %s39 = sphi 0, %s38
    %s55 = sphi 0, %s39
    %s63 = sphi 0, %s65
    %s66 = sphi 0, %s63
    %s67 = sphi 0, %s66
    %s83 = sphi 0, %s67
    %s91 = sphi 0, %s93
    %s94 = sphi 0, %s91
    %s95 = sphi 0, %s94
    %s111 = sphi 0, %s95
    %s119 = sphi 0, %s121
    %s122 = sphi 0, %s119
    %s123 = sphi 0, %s122
    %s139 = sphi 0, %s123
    %s147 = sphi 0, %s149
    %s150 = sphi 0, %s147
    %s151 = sphi 0, %s150
    %s167 = sphi 0, %s151
    %s175 = sphi 0, %s177
    %s178 = sphi 0, %s175
    %s179 = sphi 0, %s178
    %s195 = sphi 0, %s179
  $region4: #{tpu_custom_call.1} parent=0 // loop_header_branch
    %14 = sbr.rel (%p12) target = $region8
  $region5: #{tpu_custom_call.1} parent=0 // loop_body
    %s16 = ssub.s32 %s11, 1
    %s17 = ssub.s32 %s11, 2
    %s24 = sadd.s32 1, %s19
    %p25 = scmp.ge.s32.totalorder %s24, 1
    %s26 = scalar_select %p25, 0, %s24
    %s27 = sadd.s32 1, %s18
    %s28 = scalar_select %p25, %s27, %s18
    %p29 = scmp.ge.s32.totalorder %s28, 2
    %s30 = scalar_select %p29, 0, %s28
    %s31 = ssub.s32 %s18, %s30
    %s32 = ssub.s32 %s19, %s26
    %s33 = sor.u32 %s31, %s32
    %p34 = scmp.eq.s32.totalorder %s33, 0
    %s36 = sadd.s32 %s35, 1
    %s37 = scalar_select %p34, %s35, %s36
    %p40 = pneg %p34
    %p41 = scmp.eq.s32.totalorder %s11, 1
    %p42 = por %p40, %p41
    %p43 = scmp.ne.s32.totalorder %s35, %s38
    %p44 = scmp.eq.s32.totalorder %s11, 0
    %p45 = por %p43, %p44
    %p46 = scmp.ne.s32.totalorder %s35, %s38
    %p47 = scmp.eq.s32.totalorder %s16, 1
    %p48 = por %p46, %p47
    %p49 = scmp.ne.s32.totalorder %s38, %s39
    %p50 = scmp.eq.s32.totalorder %s16, 0
    %p51 = por %p49, %p50
    %p52 = scmp.ne.s32.totalorder %s38, %s39
    %p53 = scmp.eq.s32.totalorder %s17, 1
    %p54 = por %p52, %p53
    %p56 = scmp.ne.s32.totalorder %s39, %s55
    %p57 = scmp.eq.s32.totalorder %s17, 0
    %p58 = por %p56, %p57
    %s59 = ssub.s32 %s18, %s30
    %s60 = ssub.s32 %s19, %s26
    %s61 = sor.u32 %s59, %s60
    %p62 = scmp.eq.s32.totalorder %s61, 0
    %s64 = sadd.s32 %s63, 1
    %s65 = scalar_select %p62, %s63, %s64
    %p68 = pneg %p62
    %p69 = scmp.eq.s32.totalorder %s11, 1
    %p70 = por %p68, %p69
    %p71 = scmp.ne.s32.totalorder %s63, %s66
    %p72 = scmp.eq.s32.totalorder %s11, 0
    %p73 = por %p71, %p72
    %p74 = scmp.ne.s32.totalorder %s63, %s66
    %p75 = scmp.eq.s32.totalorder %s16, 1
    %p76 = por %p74, %p75
    %p77 = scmp.ne.s32.totalorder %s66, %s67
    %p78 = scmp.eq.s32.totalorder %s16, 0
    %p79 = por %p77, %p78
    %p80 = scmp.ne.s32.totalorder %s66, %s67
    %p81 = scmp.eq.s32.totalorder %s17, 1
    %p82 = por %p80, %p81
    %p84 = scmp.ne.s32.totalorder %s67, %s83
    %p85 = scmp.eq.s32.totalorder %s17, 0
    %p86 = por %p84, %p85
    %s87 = ssub.s32 %s18, %s30
    %s88 = ssub.s32 %s19, %s26
    %s89 = sor.u32 %s87, %s88
    %p90 = scmp.eq.s32.totalorder %s89, 0
    %s92 = sadd.s32 %s91, 1
    %s93 = scalar_select %p90, %s91, %s92
    %p96 = pneg %p90
    %p97 = scmp.eq.s32.totalorder %s11, 1
    %p98 = por %p96, %p97
    %p99 = scmp.ne.s32.totalorder %s91, %s94
    %p100 = scmp.eq.s32.totalorder %s11, 0
    %p101 = por %p99, %p100
    %p102 = scmp.ne.s32.totalorder %s91, %s94
    %p103 = scmp.eq.s32.totalorder %s16, 1
    %p104 = por %p102, %p103
    %p105 = scmp.ne.s32.totalorder %s94, %s95
    %p106 = scmp.eq.s32.totalorder %s16, 0
    %p107 = por %p105, %p106
    %p108 = scmp.ne.s32.totalorder %s94, %s95
    %p109 = scmp.eq.s32.totalorder %s17, 1
    %p110 = por %p108, %p109
    %p112 = scmp.ne.s32.totalorder %s95, %s111
    %p113 = scmp.eq.s32.totalorder %s17, 0
    %p114 = por %p112, %p113
    %s115 = ssub.s32 %s18, %s30
    %s116 = ssub.s32 %s19, %s26
    %s117 = sor.u32 %s115, %s116
    %p118 = scmp.eq.s32.totalorder %s117, 0
    %s120 = sadd.s32 %s119, 1
    %s121 = scalar_select %p118, %s119, %s120
    %p124 = pneg %p118
    %p125 = scmp.eq.s32.totalorder %s11, 1
    %p126 = por %p124, %p125
    %p127 = scmp.ne.s32.totalorder %s119, %s122
    %p128 = scmp.eq.s32.totalorder %s11, 0
    %p129 = por %p127, %p128
    %p130 = scmp.ne.s32.totalorder %s119, %s122
    %p131 = scmp.eq.s32.totalorder %s16, 1
    %p132 = por %p130, %p131
    %p133 = scmp.ne.s32.totalorder %s122, %s123
    %p134 = scmp.eq.s32.totalorder %s16, 0
    %p135 = por %p133, %p134
    %p136 = scmp.ne.s32.totalorder %s122, %s123
    %p137 = scmp.eq.s32.totalorder %s17, 1
    %p138 = por %p136, %p137
    %p140 = scmp.ne.s32.totalorder %s123, %s139
    %p141 = scmp.eq.s32.totalorder %s17, 0
    %p142 = por %p140, %p141
    %s143 = ssub.s32 %s18, %s30
    %s144 = ssub.s32 %s19, %s26
    %s145 = sor.u32 %s143, %s144
    %p146 = scmp.eq.s32.totalorder %s145, 0
    %s148 = sadd.s32 %s147, 1
    %s149 = scalar_select %p146, %s147, %s148
    %p152 = pneg %p146
    %p153 = scmp.eq.s32.totalorder %s11, 1
    %p154 = por %p152, %p153
    %p155 = scmp.ne.s32.totalorder %s147, %s150
    %p156 = scmp.eq.s32.totalorder %s11, 0
    %p157 = por %p155, %p156
    %p158 = scmp.ne.s32.totalorder %s147, %s150
    %p159 = scmp.eq.s32.totalorder %s16, 1
    %p160 = por %p158, %p159
    %p161 = scmp.ne.s32.totalorder %s150, %s151
    %p162 = scmp.eq.s32.totalorder %s16, 0
    %p163 = por %p161, %p162
    %p164 = scmp.ne.s32.totalorder %s150, %s151
    %p165 = scmp.eq.s32.totalorder %s17, 1
    %p166 = por %p164, %p165
    %p168 = scmp.ne.s32.totalorder %s151, %s167
    %p169 = scmp.eq.s32.totalorder %s17, 0
    %p170 = por %p168, %p169
    %s171 = ssub.s32 %s18, %s30
    %s172 = ssub.s32 %s19, %s26
    %s173 = sor.u32 %s171, %s172
    %p174 = scmp.eq.s32.totalorder %s173, 0
    %s176 = sadd.s32 %s175, 1
    %s177 = scalar_select %p174, %s175, %s176
    %p180 = pneg %p174
    %p181 = scmp.eq.s32.totalorder %s11, 1
    %p182 = por %p180, %p181
    %p183 = scmp.ne.s32.totalorder %s175, %s178
    %p184 = scmp.eq.s32.totalorder %s11, 0
    %p185 = por %p183, %p184
    %p186 = scmp.ne.s32.totalorder %s175, %s178
    %p187 = scmp.eq.s32.totalorder %s16, 1
    %p188 = por %p186, %p187
    %p189 = scmp.ne.s32.totalorder %s178, %s179
    %p190 = scmp.eq.s32.totalorder %s16, 0
    %p191 = por %p189, %p190
    %p192 = scmp.ne.s32.totalorder %s178, %s179
    %p193 = scmp.eq.s32.totalorder %s17, 1
    %p194 = por %p192, %p193
    %p196 = scmp.ne.s32.totalorder %s179, %s195
    %p197 = scmp.eq.s32.totalorder %s17, 0
    %p198 = por %p196, %p197
    %p199 = scmp.le.s32.totalorder 1, %s11
    %p200 = scmp.lt.s32.totalorder %s11, 3
    %p201 = pnand %p199, %p200
    %p202 = pneg %p201
    // Predicated region
    $region9: #{tpu_custom_call.1} parent=5 // pred_check
      _
    $region10: #{tpu_custom_call.1} parent=5 // pred_check_branch
      %204 = sbr.rel (%p201) target = $region12
    $region11: #{tpu_custom_call.1} parent=5 // pred_region
      %s205 = ssub.s32 %s11, 1
    $region12: #{tpu_custom_call.1} parent=5 // pred_fallthru
      _
    %p206 = scmp.lt.s32.totalorder %s11, 2
    // Predicated region
    $region13: #{tpu_custom_call.1} parent=5 // pred_check
      %p207 = pneg %p206
    $region14: #{tpu_custom_call.1} parent=5 // pred_check_branch
      %209 = sbr.rel (%p207) target = $region16
    $region15: #{tpu_custom_call.1} parent=5 // pred_region
      // Predicated region
      $region17: #{tpu_custom_call.1} parent=15 // pred_check
        %p210 = pneg %p45
      $region18: #{tpu_custom_call.1} parent=15 // pred_check_branch
        %212 = sbr.rel (%p210) target = $region20
      $region19: #{tpu_custom_call.1} parent=15 // pred_region
        %s213 = smul.u32 2, %s19
        %p214 = scmp.lt.s32.totalorder %s18, 1
        %s215 = scalar_select %p214, %s18, 1
        %p216 = scmp.lt.s32.totalorder %s213, 1
        %s217 = scalar_select %p216, %s213, 1
        %s218 = smul.addr %s215, 2
        %s219 = sadd.s32 %s217, %s218
        %s220 = scalar_lea.vmem %s0, %s219
        %s221 = smul.u32 2, %s19
      $region20: #{tpu_custom_call.1} parent=15 // pred_fallthru
        _
      // Predicated region
      $region21: #{tpu_custom_call.1} parent=15 // pred_check
        %p222 = pneg %p73
      $region22: #{tpu_custom_call.1} parent=15 // pred_check_branch
        %224 = sbr.rel (%p222) target = $region24
      $region23: #{tpu_custom_call.1} parent=15 // pred_region
        %s225 = smul.u32 2, %s19
        %p226 = scmp.lt.s32.totalorder %s18, 1
        %s227 = scalar_select %p226, %s18, 1
        %p228 = scmp.lt.s32.totalorder %s225, 1
        %s229 = scalar_select %p228, %s225, 1
        %s230 = smul.addr %s227, 2
        %s231 = sadd.s32 %s229, %s230
        %s232 = smul.addr %s231, 2
        %s233 = scalar_lea.vmem %s1, %s232
        %s234 = smul.u32 2, %s19
      $region24: #{tpu_custom_call.1} parent=15 // pred_fallthru
        _
      // Predicated region
      $region25: #{tpu_custom_call.1} parent=15 // pred_check
        %p235 = pneg %p101
      $region26: #{tpu_custom_call.1} parent=15 // pred_check_branch
        %237 = sbr.rel (%p235) target = $region28
      $region27: #{tpu_custom_call.1} parent=15 // pred_region
        %s238 = smul.u32 2, %s19
        %p239 = scmp.lt.s32.totalorder %s18, 1
        %s240 = scalar_select %p239, %s18, 1
        %p241 = scmp.lt.s32.totalorder %s238, 1
        %s242 = scalar_select %p241, %s238, 1
        %s243 = smul.addr %s240, 2
        %s244 = sadd.s32 %s242, %s243
        %s245 = smul.addr %s244, 4
        %s246 = scalar_lea.vmem %s2, %s245
        %s247 = smul.u32 2, %s19
      $region28: #{tpu_custom_call.1} parent=15 // pred_fallthru
        _
      // Predicated region
      $region29: #{tpu_custom_call.1} parent=15 // pred_check
        %p248 = pneg %p129
      $region30: #{tpu_custom_call.1} parent=15 // pred_check_branch
        %250 = sbr.rel (%p248) target = $region32
      $region31: #{tpu_custom_call.1} parent=15 // pred_region
        %s251 = smul.u32 2, %s19
        %p252 = scmp.lt.s32.totalorder %s18, 1
        %s253 = scalar_select %p252, %s18, 1
        %p254 = scmp.lt.s32.totalorder %s251, 1
        %s255 = scalar_select %p254, %s251, 1
        %s256 = smul.addr %s253, 2
        %s257 = sadd.s32 %s255, %s256
        %s258 = smul.addr %s257, 4
        %s259 = scalar_lea.vmem %s3, %s258
        %s260 = smul.u32 2, %s19
      $region32: #{tpu_custom_call.1} parent=15 // pred_fallthru
        _
      // Predicated region
      $region33: #{tpu_custom_call.1} parent=15 // pred_check
        %p261 = pneg %p157
      $region34: #{tpu_custom_call.1} parent=15 // pred_check_branch
        %263 = sbr.rel (%p261) target = $region36
      $region35: #{tpu_custom_call.1} parent=15 // pred_region
        %s264 = smul.u32 2, %s19
        %p265 = scmp.lt.s32.totalorder %s18, 1
        %s266 = scalar_select %p265, %s18, 1
        %p267 = scmp.lt.s32.totalorder %s264, 1
        %s268 = scalar_select %p267, %s264, 1
        %s269 = smul.addr %s266, 2
        %s270 = sadd.s32 %s268, %s269
        %s271 = smul.addr %s270, 8
        %s272 = scalar_lea.vmem %s4, %s271
        %s273 = smul.u32 2, %s19
      $region36: #{tpu_custom_call.1} parent=15 // pred_fallthru
        _
    $region16: #{tpu_custom_call.1} parent=5 // pred_fallthru
      _
    %p274 = scmp.le.s32.totalorder 1, %s11
    %p275 = scmp.lt.s32.totalorder %s11, 3
    %p276 = pnand %p274, %p275
    %p277 = pneg %p276
    // Predicated region
    $region37: #{tpu_custom_call.1} parent=5 // pred_check
      _
    $region38: #{tpu_custom_call.1} parent=5 // pred_check_branch
      %279 = sbr.rel (%p276) target = $region40
    $region39: #{tpu_custom_call.1} parent=5 // pred_region
      %s280 = ssub.s32 %s11, 1
      %s281 = smul.u32 2, %s21
      %p282 = scmp.lt.s32.totalorder %s20, 1
      %s283 = scalar_select %p282, %s20, 1
      %p284 = scmp.lt.s32.totalorder %s281, 1
      %s285 = scalar_select %p284, %s281, 1
      %s286 = smul.addr %s283, 2
      %s287 = sadd.s32 %s285, %s286
      %s288 = scalar_lea.vmem %s0, %s287
      %p289 = pneg %p51
      %p290 = pneg %p48
      %s291 = smul.u32 2, %s21
      %p292 = scmp.lt.s32.totalorder %s20, 1
      %s293 = scalar_select %p292, %s20, 1
      %p294 = scmp.lt.s32.totalorder %s291, 1
      %s295 = scalar_select %p294, %s291, 1
      %s296 = smul.addr %s293, 2
      %s297 = sadd.s32 %s295, %s296
      %s298 = smul.addr %s297, 2
      %s299 = scalar_lea.vmem %s1, %s298
      %p300 = pneg %p79
      %p301 = pneg %p76
      %s302 = smul.u32 2, %s21
      %p303 = scmp.lt.s32.totalorder %s20, 1
      %s304 = scalar_select %p303, %s20, 1
      %p305 = scmp.lt.s32.totalorder %s302, 1
      %s306 = scalar_select %p305, %s302, 1
      %s307 = smul.addr %s304, 2
      %s308 = sadd.s32 %s306, %s307
      %s309 = smul.addr %s308, 4
      %s310 = scalar_lea.vmem %s2, %s309
      %p311 = pneg %p107
      %p312 = pneg %p104
      %s313 = smul.u32 2, %s21
      %p314 = scmp.lt.s32.totalorder %s20, 1
      %s315 = scalar_select %p314, %s20, 1
      %p316 = scmp.lt.s32.totalorder %s313, 1
      %s317 = scalar_select %p316, %s313, 1
      %s318 = smul.addr %s315, 2
      %s319 = sadd.s32 %s317, %s318
      %s320 = smul.addr %s319, 4
      %s321 = scalar_lea.vmem %s3, %s320
      %p322 = pneg %p135
      %p323 = pneg %p132
      %s324 = smul.u32 2, %s21
      %p325 = scmp.lt.s32.totalorder %s20, 1
      %s326 = scalar_select %p325, %s20, 1
      %p327 = scmp.lt.s32.totalorder %s324, 1
      %s328 = scalar_select %p327, %s324, 1
      %s329 = smul.addr %s326, 2
      %s330 = sadd.s32 %s328, %s329
      %s331 = smul.addr %s330, 8
      %s332 = scalar_lea.vmem %s4, %s331
      %p333 = pneg %p163
      %p334 = pneg %p160
      %p335 = pneg %p191
      %p336 = pneg %p188
      %s337 = smul.u32 2, %s21
      %p338 = scmp.lt.s32.totalorder %s20, 1
      %s339 = scalar_select %p338, %s20, 1
      %p340 = scmp.lt.s32.totalorder %s337, 1
      %s341 = scalar_select %p340, %s337, 1
      %s342 = smul.addr %s339, 6
      %s343 = sadd.s32 %s341, %s342
      %s344 = smul.addr %s343, 8
      %s345 = scalar_lea.vmem %s5, %s344
      %s346 = smul.u32 2, %s21
      %p347 = scmp.lt.s32.totalorder %s20, 1
      %s348 = scalar_select %p347, %s20, 1
      %p349 = scmp.lt.s32.totalorder %s346, 1
      %s350 = scalar_select %p349, %s346, 1
      %s351 = smul.addr %s348, 2
      %s352 = sadd.s32 %s350, %s351
      %s353 = scalar_lea.vmem %s0, %s352
      %s354 = smul.u32 2, %s21
      %s355 = smul.u32 2, %s21
      %p356 = scmp.lt.s32.totalorder %s20, 1
      %s357 = scalar_select %p356, %s20, 1
      %p358 = scmp.lt.s32.totalorder %s355, 1
      %s359 = scalar_select %p358, %s355, 1
      %s360 = smul.addr %s357, 2
      %s361 = sadd.s32 %s359, %s360
      %s362 = smul.addr %s361, 2
      %s363 = scalar_lea.vmem %s1, %s362
      %s364 = smul.u32 2, %s21
      %s365 = smul.u32 2, %s21
      %p366 = scmp.lt.s32.totalorder %s20, 1
      %s367 = scalar_select %p366, %s20, 1
      %p368 = scmp.lt.s32.totalorder %s365, 1
      %s369 = scalar_select %p368, %s365, 1
      %s370 = smul.addr %s367, 2
      %s371 = sadd.s32 %s369, %s370
      %s372 = smul.addr %s371, 4
      %s373 = scalar_lea.vmem %s2, %s372
      %s374 = smul.u32 2, %s21
      %s375 = smul.u32 2, %s21
      %p376 = scmp.lt.s32.totalorder %s20, 1
      %s377 = scalar_select %p376, %s20, 1
      %p378 = scmp.lt.s32.totalorder %s375, 1
      %s379 = scalar_select %p378, %s375, 1
      %s380 = smul.addr %s377, 2
      %s381 = sadd.s32 %s379, %s380
      %s382 = smul.addr %s381, 4
      %s383 = scalar_lea.vmem %s3, %s382
      %s384 = smul.u32 2, %s21
      %s385 = smul.u32 2, %s21
      %p386 = scmp.lt.s32.totalorder %s20, 1
      %s387 = scalar_select %p386, %s20, 1
      %p388 = scmp.lt.s32.totalorder %s385, 1
      %s389 = scalar_select %p388, %s385, 1
      %s390 = smul.addr %s387, 2
      %s391 = sadd.s32 %s389, %s390
      %s392 = smul.addr %s391, 8
      %s393 = scalar_lea.vmem %s4, %s392
      %s394 = smul.u32 2, %s21
      %s395 = smul.u32 2, %s21
      %p396 = scmp.lt.s32.totalorder %s20, 1
      %s397 = scalar_select %p396, %s20, 1
      %p398 = scmp.lt.s32.totalorder %s395, 1
      %s399 = scalar_select %p398, %s395, 1
      %s400 = smul.addr %s397, 6
      %s401 = sadd.s32 %s399, %s400
      %s402 = smul.addr %s401, 8
      %s403 = scalar_lea.vmem %s5, %s402
      %s404 = smul.u32 2, %s21
      %v405 = vld [vmem:[%s353] sm:$0x3]
      %v406 = vlaneseq
      %vm407 = vcmp.ge.s32.totalorder %v406, 0
      %vm408 = vcmp.lt.s32.totalorder %v406, 256
      %vm409 = vmand %vm407, %vm408
      %410 = vst.msk [vmem:[%s403] ss:$8 sm:$0x3] %vm409, %v405
      %411 = vst.msk [vmem:[%s403] ss:$8 sm:$0x0] %vm409, %v405
      %v412 = vld [vmem:[%s363] sm:$0xf]
      %v415 = vunpack.c.l.s4 1983009808
      %v416 = vunpack.c.0.s8 %v415
      %v417 = vlaneseq
      %v418 = vshrl.u32 %v417, 7
      %v419 = vsub.s32 %v416, %v418
      %v420 = vrot.slane %v412, %v419
      %v421 = vcombine.high %v420, %v420
      %v422 = vrot.slane %v420, 7
      %v423 = vrot.slane %v421, 7
      %426 = vst [vmem:[%s403] sm:$0x6] %v422
      %427 = vst [vmem:[%s403 + $0x8] sm:$0x6] %v423
      %v428 = vld [vmem:[%s373] sm:$0x77]
      %v430 = vcombine.high %v428, %v428
      %v431 = vrot.slane %v428, 5
      %v432 = vrot.slane %v430, 5
      %435 = vst [vmem:[%s403] sm:$0x38] %v431
      %436 = vst [vmem:[%s403 + $0x8] sm:$0x38] %v432
      %v437 = vld [vmem:[%s383] sm:$0xff]
      %v439 = vcombine.high %v437, %v437
      %v440 = vrot.slane %v437, 2
      %v441 = vrot.slane %v439, 2
      %444 = vst [vmem:[%s403] sm:$0xc0] %v440
      %445 = vst [vmem:[%s403 + $0x8] sm:$0xc0] %v441
      %446 = vst [vmem:[%s403 + $0x10] sm:$0x3] %v440
      %447 = vst [vmem:[%s403 + $0x18] sm:$0x3] %v441
      %v448 = vld [vmem:[%s393] sm:$0x1f]
      %v449 = vld [vmem:[%s393 + $0x8] sm:$0x1f]
      %v452 = vrot.slane %v448, 6
      %v453 = vrot.slane %v449, 6
      %456 = vst [vmem:[%s403 + $0x10] sm:$0x7c] %v452
      %457 = vst [vmem:[%s403 + $0x18] sm:$0x7c] %v453
      %v458 = vld [vmem:[%s353] sm:$0x3]
      %s459 = scalar_lea.vmem %s403, 23
      %460 = vst.msk [vmem:[%s459] ss:$8 sm:$0x3] %vm409, %v458
      %461 = vst.msk [vmem:[%s459] ss:$8 sm:$0x0] %vm409, %v458
      %v462 = vld [vmem:[%s363] ss:$2 sm:$0x3]
      %s463 = scalar_lea.vmem %s403, 32
      %464 = vst.msk [vmem:[%s463] ss:$8 sm:$0x3] %vm409, %v462
      %465 = vst.msk [vmem:[%s463] ss:$8 sm:$0x0] %vm409, %v462
      %s466 = smul.u32 2, %s21
      %p467 = scmp.lt.s32.totalorder %s20, 1
      %s468 = scalar_select %p467, %s20, 1
      %p469 = scmp.lt.s32.totalorder %s466, 1
      %s470 = scalar_select %p469, %s466, 1
      %s471 = smul.addr %s468, 6
      %s472 = sadd.s32 %s470, %s471
      %s473 = smul.addr %s472, 8
      %s474 = scalar_lea.vmem %s5, %s473
      // Predicated region
      $region41: #{tpu_custom_call.1} parent=39 // pred_check
        %p475 = pneg %p188
      $region42: #{tpu_custom_call.1} parent=39 // pred_check_branch
        %477 = sbr.rel (%p475) target = $region44
      $region43: #{tpu_custom_call.1} parent=39 // pred_region
        %s478 = smul.u32 2, %s21
      $region44: #{tpu_custom_call.1} parent=39 // pred_fallthru
        _
    $region40: #{tpu_custom_call.1} parent=5 // pred_fallthru
      _
    %p479 = scmp.le.s32.totalorder 2, %s11
    // Predicated region
    $region45: #{tpu_custom_call.1} parent=5 // pred_check
      %p480 = pneg %p479
    $region46: #{tpu_custom_call.1} parent=5 // pred_check_branch
      %482 = sbr.rel (%p480) target = $region48
    $region47: #{tpu_custom_call.1} parent=5 // pred_region
      %s483 = ssub.s32 %s11, 2
      // Predicated region
      $region49: #{tpu_custom_call.1} parent=47 // pred_check
        %p484 = pneg %p194
      $region50: #{tpu_custom_call.1} parent=47 // pred_check_branch
        %486 = sbr.rel (%p484) target = $region52
      $region51: #{tpu_custom_call.1} parent=47 // pred_region
        %s487 = smul.u32 2, %s23
        %p488 = scmp.lt.s32.totalorder %s22, 1
        %s489 = scalar_select %p488, %s22, 1
        %p490 = scmp.lt.s32.totalorder %s487, 1
        %s491 = scalar_select %p490, %s487, 1
        %s492 = smul.addr %s489, 6
        %s493 = sadd.s32 %s491, %s492
        %s494 = smul.addr %s493, 8
        %s495 = scalar_lea.vmem %s5, %s494
      $region52: #{tpu_custom_call.1} parent=47 // pred_fallthru
        _
    $region48: #{tpu_custom_call.1} parent=5 // pred_fallthru
      _
  $region6: #{tpu_custom_call.1} parent=0 // loop_footer
    %s15 = sadd.s32 1, %s11
  $region7: #{tpu_custom_call.1} parent=0 // loop_footer_branch
    %10 = sbr.rel target = $region3
  $region8: #{tpu_custom_call.1} parent=0 // loop_exit
    _

</llo_original>
